<compile_context>
chip_gen: v5e
topology: v5e:2x2
jax: 0.10.0
libtpu: 0.0.40
codegen_flags: <defaults>
</compile_context>

<pallas_src>
import functools

import jax
import jax.numpy as jnp
from jax import lax
from jax.experimental import pallas as pl
from jax.experimental.pallas import tpu as pltpu


def _local_attention_kernel(x_ref, w1_ref, shift1_ref, w2_ref, b2_ref, o_ref,
                            xpad_ref, *, H, W, pad):
    # x_ref     : (1, C, H*W)       one batch element; channels in sublanes,
    #                               flattened spatial in lanes (lane-dense).
    # w1_ref    : (C, 9*C)          BN-folded conv1 weight, columns ordered
    #                               (kh, kw, ci) to match the im2col below.
    # shift1_ref: (C, 1)            BN-folded conv1 bias/shift.
    # w2_ref    : (C, C)            conv2 (1x1) weight (Cout, Cin).
    # b2_ref    : (C, 1)            conv2 bias.
    # o_ref     : (1, C, H*W)
    # xpad_ref  : (C, H*W + 2*pad)  VMEM scratch: zero halo | x | zero halo.
    C = x_ref.shape[1]
    HW = H * W

    # Drop the input into the centre of the haloed scratch.  Halos are
    # re-zeroed every step (so correctness does not depend on which core runs
    # which grid step).  All three stores are lane-aligned since pad % 128 == 0.
    zero_halo = jnp.zeros((C, pad), dtype=xpad_ref.dtype)
    xpad_ref[:, :pad] = zero_halo
    xpad_ref[:, pad + HW:] = zero_halo
    xpad_ref[:, pad:pad + HW] = x_ref[0]

    # Column index of every lane, used to mask horizontal wrap-around of the
    # flattened shifts (vertical out-of-range reads land in the zero halo).
    w_idx = lax.broadcasted_iota(jnp.int32, (C, HW), 1) % W
    not_first_col = w_idx != 0          # source valid when dw == -1
    not_last_col = w_idx != (W - 1)     # source valid when dw == +1

    # im2col: 9 flat-shifted views of the haloed input, stacked along sublanes.
    pieces = []
    for dh in (-1, 0, 1):
        for dw in (-1, 0, 1):
            d = dh * W + dw
            shifted = xpad_ref[:, pad + d: pad + d + HW]      # (C, HW)
            if dw == -1:
                shifted = jnp.where(not_first_col, shifted, 0.0)
            elif dw == 1:
                shifted = jnp.where(not_last_col, shifted, 0.0)
            pieces.append(shifted)
    col = jnp.concatenate(pieces, axis=0)                     # (9*C, HW)

    # conv1 (+ folded BN) as a single MXU matmul, then ReLU.
    acc = jnp.dot(w1_ref[...], col, preferred_element_type=jnp.float32)
    hidden = jnp.maximum(acc + shift1_ref[...], 0.0)          # (C, HW)

    # conv2 (1x1) == channel matmul + bias.  Output is lane-dense (last dim HW).
    out = jnp.dot(w2_ref[...], hidden,
                  preferred_element_type=jnp.float32) + b2_ref[...]
    o_ref[0] = out.astype(o_ref.dtype)


@jax.jit
def local_attention_forward(x_nchw, params):
    """x_nchw: (B, C, H, W) float32. Returns (B, C, H, W) float32 (NCHW)."""
    w1, b1, gamma, beta, run_mean, run_var, w2, b2 = (
        params["w1"], params["b1"], params["gamma"], params["beta"],
        params["run_mean"], params["run_var"], params["w2"], params["b2"])
    eps = 1e-5

    B, C, H, W = x_nchw.shape
    HW = H * W
    # Contiguous (free) reshape: no NCHW<->NHWC transposes, no XLA-side pad.
    x_flat = x_nchw.reshape(B, C, HW)

    # Fold BN (inference) into conv1:  bn(conv1(x)+b1) = scale*conv1(x) + shift1
    scale = gamma / jnp.sqrt(run_var + eps)                      # (C,)
    w1_folded = w1 * scale[:, None, None, None]                  # (Cout,Cin,3,3)
    shift1 = (b1 - run_mean) * scale + beta                      # (C,)

    # (Cout, Cin, kh, kw) -> (Cout, kh, kw, Cin) -> (Cout, 9*Cin); the column
    # order (kh, kw, ci) matches the im2col built inside the kernel.  These are
    # tiny, grid-invariant constants folded at trace time.
    w1_mat = jnp.transpose(w1_folded, (0, 2, 3, 1)).reshape(C, 9 * C)
    w2_mat = w2[:, :, 0, 0]                                      # (Cout, Cin)

    # Halo width for the flattened shifts; must be >= W + 1 and is kept
    # 128-aligned so every in-kernel store to the scratch is lane-aligned.
    pad = ((W + 1 + 127) // 128) * 128

    kernel = functools.partial(_local_attention_kernel, H=H, W=W, pad=pad)
    out_flat = pl.pallas_call(
        kernel,
        out_shape=jax.ShapeDtypeStruct((B, C, HW), jnp.float32),
        grid_spec=pltpu.PrefetchScalarGridSpec(
            num_scalar_prefetch=0,
            grid=(B,),
            in_specs=[
                pl.BlockSpec((1, C, HW), lambda b: (b, 0, 0)),   # x (per batch)
                pl.BlockSpec((C, 9 * C), lambda b: (0, 0)),      # folded conv1 W
                pl.BlockSpec((C, 1), lambda b: (0, 0)),          # folded conv1 b
                pl.BlockSpec((C, C), lambda b: (0, 0)),          # conv2 W
                pl.BlockSpec((C, 1), lambda b: (0, 0)),          # conv2 b
            ],
            out_specs=pl.BlockSpec((1, C, HW), lambda b: (b, 0, 0)),
            scratch_shapes=[pltpu.VMEM((C, HW + 2 * pad), jnp.float32)],
        ),
        compiler_params=pltpu.CompilerParams(
            dimension_semantics=("parallel",)),
    )(x_flat, w1_mat, shift1.reshape(C, 1), w2_mat, b2.reshape(C, 1))

    # Free reshape back to the PyTorch NCHW convention.
    return out_flat.reshape(B, C, H, W)


def _reference_forward(x_nchw, params):
    """Pure-JAX reference (lax.conv) for correctness checking."""
    w1, b1, gamma, beta, run_mean, run_var, w2, b2 = (
        params["w1"], params["b1"], params["gamma"], params["beta"],
        params["run_mean"], params["run_var"], params["w2"], params["b2"])
    eps = 1e-5
    y = lax.conv_general_dilated(
        x_nchw, w1, window_strides=(1, 1), padding=((1, 1), (1, 1)),
        dimension_numbers=("NCHW", "OIHW", "NCHW"))
    y = y + b1[None, :, None, None]
    y = (y - run_mean[None, :, None, None]) / jnp.sqrt(
        run_var[None, :, None, None] + eps)
    y = y * gamma[None, :, None, None] + beta[None, :, None, None]
    y = jnp.maximum(y, 0.0)
    y = lax.conv_general_dilated(
        y, w2, window_strides=(1, 1), padding=((0, 0), (0, 0)),
        dimension_numbers=("NCHW", "OIHW", "NCHW"))
    return y + b2[None, :, None, None]


def _init_params(key, C):
    ks = jax.random.split(key, 8)
    return {
        "w1": jax.random.normal(ks[0], (C, C, 3, 3), jnp.float32) * 0.1,
        "b1": jax.random.normal(ks[1], (C,), jnp.float32) * 0.1,
        "gamma": 1.0 + 0.1 * jax.random.normal(ks[2], (C,), jnp.float32),
        "beta": 0.1 * jax.random.normal(ks[3], (C,), jnp.float32),
        "run_mean": 0.1 * jax.random.normal(ks[4], (C,), jnp.float32),
        "run_var": 0.5 + jnp.abs(jax.random.normal(ks[5], (C,), jnp.float32)),
        "w2": jax.random.normal(ks[6], (C, C, 1, 1), jnp.float32) * 0.1,
        "b2": jax.random.normal(ks[7], (C,), jnp.float32) * 0.1,
    }


if __name__ == "__main__":
    key = jax.random.PRNGKey(0)
    k_x, k_p = jax.random.split(key)

    B, C, H, W = 2, 4, 16, 16
    x = jax.random.normal(k_x, (B, C, H, W), jnp.float32)
    params = _init_params(k_p, C)

    out = jax.block_until_ready(local_attention_forward(x, params))
    ref = jax.block_until_ready(_reference_forward(x, params))

    assert out.shape == (B, C, H, W)
    max_err = jnp.max(jnp.abs(out - ref))
    assert jnp.allclose(out, ref, atol=2e-4, rtol=2e-4), (
        f"mismatch vs reference: max abs err = {max_err}")

    print("KERNEL_OK")
</pallas_src>

<mosaic_0001>
module attributes {stable_mosaic.version = 11 : i64} {
  func.func @_local_attention_kernel(%arg0: i32, %arg1: memref<1x4x256xf32, #tpu.memory_space<vmem>>, %arg2: memref<4x36xf32, #tpu.memory_space<vmem>>, %arg3: memref<4x1xf32, #tpu.memory_space<vmem>>, %arg4: memref<4x4xf32, #tpu.memory_space<vmem>>, %arg5: memref<4x1xf32, #tpu.memory_space<vmem>>, %arg6: memref<1x4x256xf32, #tpu.memory_space<vmem>>, %arg7: memref<4x512xf32, #tpu.memory_space<vmem>>) attributes {dimension_semantics = [#tpu.dimension_semantics<parallel>], iteration_bounds = array<i64: 2>, scalar_prefetch = 0 : i64, scratch_operands = 1 : i64, tpu.core_type = #tpu.core_type<tc>, window_params = [{transform_indices = @transform_0, window_bounds = array<i64: 1, 4, 256>}, {pipeline_mode = #tpu.pipeline_mode<synchronous>, transform_indices = @transform_1, window_bounds = array<i64: 4, 36>}, {pipeline_mode = #tpu.pipeline_mode<synchronous>, transform_indices = @transform_2, window_bounds = array<i64: 4, 1>}, {pipeline_mode = #tpu.pipeline_mode<synchronous>, transform_indices = @transform_3, window_bounds = array<i64: 4, 4>}, {pipeline_mode = #tpu.pipeline_mode<synchronous>, transform_indices = @transform_4, window_bounds = array<i64: 4, 1>}, {transform_indices = @transform_5, window_bounds = array<i64: 1, 4, 256>}]} {
    %cst = arith.constant 0.000000e+00 : f32
    %0 = vector.broadcast %cst : f32 to vector<4x128xf32>
    %c0 = arith.constant 0 : index
    %c0_0 = arith.constant 0 : index
    %1 = vector.load %arg7[%c0, %c0_0] : memref<4x512xf32, #tpu.memory_space<vmem>>, vector<4x128xf32>
    tpu.vector_store %arg7[%c0, %c0_0], %0 {strides = array<i32>} : memref<4x512xf32, #tpu.memory_space<vmem>>, vector<4x128xf32>,
    %c0_1 = arith.constant 0 : index
    %c384 = arith.constant 384 : index
    %2 = vector.load %arg7[%c0_1, %c384] : memref<4x512xf32, #tpu.memory_space<vmem>>, vector<4x128xf32>
    tpu.vector_store %arg7[%c0_1, %c384], %0 {strides = array<i32>} : memref<4x512xf32, #tpu.memory_space<vmem>>, vector<4x128xf32>,
    %c0_2 = arith.constant 0 : index
    %c0_3 = arith.constant 0 : index
    %c0_4 = arith.constant 0 : index
    %3 = vector.load %arg1[%c0_2, %c0_3, %c0_4] : memref<1x4x256xf32, #tpu.memory_space<vmem>>, vector<1x4x256xf32>
    %4 = vector.shape_cast %3 : vector<1x4x256xf32> to vector<4x256xf32>
    %c0_5 = arith.constant 0 : index
    %c128 = arith.constant 128 : index
    %5 = vector.load %arg7[%c0_5, %c128] : memref<4x512xf32, #tpu.memory_space<vmem>>, vector<4x256xf32>
    tpu.vector_store %arg7[%c0_5, %c128], %4 {strides = array<i32>} : memref<4x512xf32, #tpu.memory_space<vmem>>, vector<4x256xf32>,
    %6 = tpu.iota {dimensions = array<i32: 1>} : vector<4x256xi32>
    %c16_i32 = arith.constant 16 : i32
    %c0_i32 = arith.constant 0 : i32
    %7 = arith.cmpi eq, %c16_i32, %c0_i32 : i32
    %c1_i32 = arith.constant 1 : i32
    %8 = arith.select %7, %c1_i32, %c16_i32 : i32
    %9 = vector.broadcast %8 : i32 to vector<4x256xi32>
    %10 = arith.remsi %6, %9 : vector<4x256xi32>
    %c0_i32_6 = arith.constant 0 : i32
    %11 = vector.broadcast %c0_i32_6 : i32 to vector<4x256xi32>
    %12 = arith.cmpi ne, %10, %11 : vector<4x256xi32>
    %c0_i32_7 = arith.constant 0 : i32
    %13 = vector.broadcast %c0_i32_7 : i32 to vector<4x256xi32>
    %14 = arith.cmpi slt, %10, %13 : vector<4x256xi32>
    %c0_i32_8 = arith.constant 0 : i32
    %15 = arith.cmpi slt, %8, %c0_i32_8 : i32
    %16 = vector.broadcast %15 : i1 to vector<4x256xi1>
    %17 = vector.broadcast %16 : vector<4x256xi1> to vector<4x256xi1>
    %18 = arith.xori %14, %17 : vector<4x256xi1>
    %19 = arith.andi %18, %12 : vector<4x256xi1>
    %20 = vector.broadcast %8 : i32 to vector<4x256xi32>
    %21 = arith.addi %10, %20 : vector<4x256xi32>
    %22 = arith.select %19, %21, %10 : vector<4x256xi1>, vector<4x256xi32>
    %c0_i32_9 = arith.constant 0 : i32
    %23 = vector.broadcast %c0_i32_9 : i32 to vector<4x256xi32>
    %24 = arith.cmpi ne, %22, %23 : vector<4x256xi32>
    %c15_i32 = arith.constant 15 : i32
    %25 = vector.broadcast %c15_i32 : i32 to vector<4x256xi32>
    %26 = arith.cmpi ne, %22, %25 : vector<4x256xi32>
    %c0_10 = arith.constant 0 : index
    %c111 = arith.constant 111 : index
    %27 = vector.load %arg7[%c0_10, %c111] : memref<4x512xf32, #tpu.memory_space<vmem>>, vector<4x256xf32>
    %cst_11 = arith.constant 0.000000e+00 : f32
    %28 = vector.broadcast %cst_11 : f32 to vector<4x256xf32>
    %29 = arith.select %24, %27, %28 : vector<4x256xi1>, vector<4x256xf32>
    %c0_12 = arith.constant 0 : index
    %c112 = arith.constant 112 : index
    %30 = vector.load %arg7[%c0_12, %c112] : memref<4x512xf32, #tpu.memory_space<vmem>>, vector<4x256xf32>
    %c0_13 = arith.constant 0 : index
    %c113 = arith.constant 113 : index
    %31 = vector.load %arg7[%c0_13, %c113] : memref<4x512xf32, #tpu.memory_space<vmem>>, vector<4x256xf32>
    %cst_14 = arith.constant 0.000000e+00 : f32
    %32 = vector.broadcast %cst_14 : f32 to vector<4x256xf32>
    %33 = arith.select %26, %31, %32 : vector<4x256xi1>, vector<4x256xf32>
    %c0_15 = arith.constant 0 : index
    %c127 = arith.constant 127 : index
    %34 = vector.load %arg7[%c0_15, %c127] : memref<4x512xf32, #tpu.memory_space<vmem>>, vector<4x256xf32>
    %cst_16 = arith.constant 0.000000e+00 : f32
    %35 = vector.broadcast %cst_16 : f32 to vector<4x256xf32>
    %36 = arith.select %24, %34, %35 : vector<4x256xi1>, vector<4x256xf32>
    %c0_17 = arith.constant 0 : index
    %c128_18 = arith.constant 128 : index
    %37 = vector.load %arg7[%c0_17, %c128_18] : memref<4x512xf32, #tpu.memory_space<vmem>>, vector<4x256xf32>
    %c0_19 = arith.constant 0 : index
    %c129 = arith.constant 129 : index
    %38 = vector.load %arg7[%c0_19, %c129] : memref<4x512xf32, #tpu.memory_space<vmem>>, vector<4x256xf32>
    %cst_20 = arith.constant 0.000000e+00 : f32
    %39 = vector.broadcast %cst_20 : f32 to vector<4x256xf32>
    %40 = arith.select %26, %38, %39 : vector<4x256xi1>, vector<4x256xf32>
    %c0_21 = arith.constant 0 : index
    %c143 = arith.constant 143 : index
    %41 = vector.load %arg7[%c0_21, %c143] : memref<4x512xf32, #tpu.memory_space<vmem>>, vector<4x256xf32>
    %cst_22 = arith.constant 0.000000e+00 : f32
    %42 = vector.broadcast %cst_22 : f32 to vector<4x256xf32>
    %43 = arith.select %24, %41, %42 : vector<4x256xi1>, vector<4x256xf32>
    %c0_23 = arith.constant 0 : index
    %c144 = arith.constant 144 : index
    %44 = vector.load %arg7[%c0_23, %c144] : memref<4x512xf32, #tpu.memory_space<vmem>>, vector<4x256xf32>
    %c0_24 = arith.constant 0 : index
    %c145 = arith.constant 145 : index
    %45 = vector.load %arg7[%c0_24, %c145] : memref<4x512xf32, #tpu.memory_space<vmem>>, vector<4x256xf32>
    %cst_25 = arith.constant 0.000000e+00 : f32
    %46 = vector.broadcast %cst_25 : f32 to vector<4x256xf32>
    %47 = arith.select %26, %45, %46 : vector<4x256xi1>, vector<4x256xf32>
    %48 = tpu.concatenate %29, %30, %33, %36, %37, %40, %43, %44, %47 in 0 : vector<4x256xf32>, vector<4x256xf32>, vector<4x256xf32>, vector<4x256xf32>, vector<4x256xf32>, vector<4x256xf32>, vector<4x256xf32>, vector<4x256xf32>, vector<4x256xf32> -> vector<36x256xf32>
    %c0_26 = arith.constant 0 : index
    %c0_27 = arith.constant 0 : index
    %49 = vector.load %arg2[%c0_26, %c0_27] : memref<4x36xf32, #tpu.memory_space<vmem>>, vector<4x36xf32>
    %cst_28 = arith.constant dense<0.000000e+00> : vector<4x256xf32>
    %50 = tpu.matmul %49, %48, %cst_28 {dimension_numbers = #tpu.dot_dimension_numbers<[1], [0], [0], [1], [0, 0, 1, 1], [], []>} : vector<4x36xf32>, vector<36x256xf32>, vector<4x256xf32> -> vector<4x256xf32>
    %c0_29 = arith.constant 0 : index
    %c0_30 = arith.constant 0 : index
    %51 = vector.load %arg3[%c0_29, %c0_30] : memref<4x1xf32, #tpu.memory_space<vmem>>, vector<4x1xf32>
    %52 = vector.broadcast %51 : vector<4x1xf32> to vector<4x256xf32>
    %53 = arith.addf %50, %52 : vector<4x256xf32>
    %cst_31 = arith.constant 0.000000e+00 : f32
    %54 = vector.broadcast %cst_31 : f32 to vector<4x256xf32>
    %55 = arith.maximumf %53, %54 : vector<4x256xf32>
    %c0_32 = arith.constant 0 : index
    %c0_33 = arith.constant 0 : index
    %56 = vector.load %arg4[%c0_32, %c0_33] : memref<4x4xf32, #tpu.memory_space<vmem>>, vector<4x4xf32>
    %cst_34 = arith.constant dense<0.000000e+00> : vector<4x256xf32>
    %57 = tpu.matmul %56, %55, %cst_34 {dimension_numbers = #tpu.dot_dimension_numbers<[1], [0], [0], [1], [0, 0, 1, 1], [], []>} : vector<4x4xf32>, vector<4x256xf32>, vector<4x256xf32> -> vector<4x256xf32>
    %c0_35 = arith.constant 0 : index
    %c0_36 = arith.constant 0 : index
    %58 = vector.load %arg5[%c0_35, %c0_36] : memref<4x1xf32, #tpu.memory_space<vmem>>, vector<4x1xf32>
    %59 = vector.broadcast %58 : vector<4x1xf32> to vector<4x256xf32>
    %60 = arith.addf %57, %59 : vector<4x256xf32>
    %c0_37 = arith.constant 0 : index
    %c0_38 = arith.constant 0 : index
    %c0_39 = arith.constant 0 : index
    %61 = vector.load %arg6[%c0_37, %c0_38, %c0_39] : memref<1x4x256xf32, #tpu.memory_space<vmem>>, vector<1x4x256xf32>
    %62 = vector.shape_cast %61 : vector<1x4x256xf32> to vector<4x256xf32>
    %63 = vector.shape_cast %60 : vector<4x256xf32> to vector<1x4x256xf32>
    tpu.vector_store %arg6[%c0_37, %c0_38, %c0_39], %63 {strides = array<i32>} : memref<1x4x256xf32, #tpu.memory_space<vmem>>, vector<1x4x256xf32>,
    return
  }
  func.func @transform_0(%arg0: i32) -> (i32, i32, i32) {
    %c0_i32 = arith.constant 0 : i32
    %c0_i32_0 = arith.constant 0 : i32
    %c0_i32_1 = arith.constant 0 : i32
    return %arg0, %c0_i32, %c0_i32_0 : i32, i32, i32
  }
  func.func @transform_1(%arg0: i32) -> (i32, i32) {
    %c0_i32 = arith.constant 0 : i32
    %c0_i32_0 = arith.constant 0 : i32
    %c0_i32_1 = arith.constant 0 : i32
    return %c0_i32, %c0_i32_0 : i32, i32
  }
  func.func @transform_2(%arg0: i32) -> (i32, i32) {
    %c0_i32 = arith.constant 0 : i32
    %c0_i32_0 = arith.constant 0 : i32
    %c0_i32_1 = arith.constant 0 : i32
    return %c0_i32, %c0_i32_0 : i32, i32
  }
  func.func @transform_3(%arg0: i32) -> (i32, i32) {
    %c0_i32 = arith.constant 0 : i32
    %c0_i32_0 = arith.constant 0 : i32
    %c0_i32_1 = arith.constant 0 : i32
    return %c0_i32, %c0_i32_0 : i32, i32
  }
  func.func @transform_4(%arg0: i32) -> (i32, i32) {
    %c0_i32 = arith.constant 0 : i32
    %c0_i32_0 = arith.constant 0 : i32
    %c0_i32_1 = arith.constant 0 : i32
    return %c0_i32, %c0_i32_0 : i32, i32
  }
  func.func @transform_5(%arg0: i32) -> (i32, i32, i32) {
    %c0_i32 = arith.constant 0 : i32
    %c0_i32_0 = arith.constant 0 : i32
    %c0_i32_1 = arith.constant 0 : i32
    return %arg0, %c0_i32, %c0_i32_0 : i32, i32, i32
  }
}

</mosaic_0001>

<llo_original>
// kernel: local_attention_forward.1
$region0: #{local_attention_forward.1}
  #allocation0 [shape = 'u32[]', space=smem, size = 0x4, offset = 0x4, fixed_abs, tag = 'smem constant byte address 0x4 - core index']
  #allocation1 [shape = 'u32[72,128]{1,0:T(1,128)}', space=vmem, size = 0x9000, scoped, tag = 'internal scratch']
  #allocation2 [shape = 'f32[4,512]{1,0:T(4,128)}', space=vmem, size = 0x2000, scoped, tag = 'scratch operand']
  %s0 = inlined_call_operand.vmem [shape: f32[2,4,256], index: 0, kind: input, shape index: {}]
  %s1 = inlined_call_operand.vmem [shape: f32[4,36], index: 1, kind: input, shape index: {}]
  %s2 = inlined_call_operand.vmem [shape: f32[4,1], index: 2, kind: input, shape index: {}]
  %s3 = inlined_call_operand.vmem [shape: f32[4,4], index: 3, kind: input, shape index: {}]
  %s4 = inlined_call_operand.vmem [shape: f32[4,1], index: 4, kind: input, shape index: {}]
  %s5 = inlined_call_operand.vmem [shape: f32[2,4,256], index: 5, kind: output, shape index: {}]
  %s6 = sld [smem:[#allocation0]]
  $region53: #{local_attention_forward.1} parent=0
    _
  %s8 = ssub.s32 1, %s6
  %s9 = scalar_select 0, %s8, %s6
  loop: start=0, step=1, limit=4
  $region2: #{local_attention_forward.1} parent=0 // loop_pre_header
    _
  $region3: #{local_attention_forward.1} parent=0 // loop_header
    %s11 = sphi 0, %s15
    %p12 = scmp.ge.s32.totalorder %s11, 4
    %s21 = sphi 0, %s23
    %s24 = sphi 0, %s21
    %s25 = sphi 0, %s24
    %s41 = sphi 0, %s25
    %s45 = sphi 0, %s45
    %s47 = sphi 0, %s45
    %s48 = sphi 0, %s47
    %s62 = sphi 0, %s48
    %s66 = sphi 0, %s66
    %s68 = sphi 0, %s66
    %s69 = sphi 0, %s68
    %s83 = sphi 0, %s69
    %s87 = sphi 0, %s87
    %s89 = sphi 0, %s87
    %s90 = sphi 0, %s89
    %s104 = sphi 0, %s90
    %s108 = sphi 0, %s108
    %s110 = sphi 0, %s108
    %s111 = sphi 0, %s110
    %s125 = sphi 0, %s111
    %s131 = sphi 0, %s133
    %s134 = sphi 0, %s131
    %s135 = sphi 0, %s134
    %s151 = sphi 0, %s135
  $region4: #{local_attention_forward.1} parent=0 // loop_header_branch
    %14 = sbr.rel (%p12) target = $region8
  $region5: #{local_attention_forward.1} parent=0 // loop_body
    %s16 = ssub.s32 %s11, 1
    %s17 = ssub.s32 %s11, 2
    %s18 = sadd.s32 %s11, 1
    %s19 = ssub.s32 %s11, %s18
    %p20 = scmp.eq.s32.totalorder %s19, 0
    %s22 = sadd.s32 %s21, 1
    %s23 = scalar_select %p20, %s21, %s22
    %p26 = pneg %p20
    %p27 = scmp.eq.s32.totalorder %s11, 1
    %p28 = por %p26, %p27
    %p29 = scmp.ne.s32.totalorder %s21, %s24
    %p30 = scmp.eq.s32.totalorder %s11, 0
    %p31 = por %p29, %p30
    %p32 = scmp.ne.s32.totalorder %s21, %s24
    %p33 = scmp.eq.s32.totalorder %s16, 1
    %p34 = por %p32, %p33
    %p35 = scmp.ne.s32.totalorder %s24, %s25
    %p36 = scmp.eq.s32.totalorder %s16, 0
    %p37 = por %p35, %p36
    %p38 = scmp.ne.s32.totalorder %s24, %s25
    %p39 = scmp.eq.s32.totalorder %s17, 1
    %p40 = por %p38, %p39
    %p42 = scmp.ne.s32.totalorder %s25, %s41
    %p43 = scmp.eq.s32.totalorder %s17, 0
    %p44 = por %p42, %p43
    %s46 = sadd.s32 %s45, 1
    %p49 = scmp.eq.s32.totalorder %s11, 1
    %p50 = scmp.ne.s32.totalorder %s45, %s47
    %p51 = scmp.eq.s32.totalorder %s11, 0
    %p52 = por %p50, %p51
    %p53 = scmp.ne.s32.totalorder %s45, %s47
    %p54 = scmp.eq.s32.totalorder %s16, 1
    %p55 = por %p53, %p54
    %p56 = scmp.ne.s32.totalorder %s47, %s48
    %p57 = scmp.eq.s32.totalorder %s16, 0
    %p58 = por %p56, %p57
    %p59 = scmp.ne.s32.totalorder %s47, %s48
    %p60 = scmp.eq.s32.totalorder %s17, 1
    %p61 = por %p59, %p60
    %p63 = scmp.ne.s32.totalorder %s48, %s62
    %p64 = scmp.eq.s32.totalorder %s17, 0
    %p65 = por %p63, %p64
    %s67 = sadd.s32 %s66, 1
    %p70 = scmp.eq.s32.totalorder %s11, 1
    %p71 = scmp.ne.s32.totalorder %s66, %s68
    %p72 = scmp.eq.s32.totalorder %s11, 0
    %p73 = por %p71, %p72
    %p74 = scmp.ne.s32.totalorder %s66, %s68
    %p75 = scmp.eq.s32.totalorder %s16, 1
    %p76 = por %p74, %p75
    %p77 = scmp.ne.s32.totalorder %s68, %s69
    %p78 = scmp.eq.s32.totalorder %s16, 0
    %p79 = por %p77, %p78
    %p80 = scmp.ne.s32.totalorder %s68, %s69
    %p81 = scmp.eq.s32.totalorder %s17, 1
    %p82 = por %p80, %p81
    %p84 = scmp.ne.s32.totalorder %s69, %s83
    %p85 = scmp.eq.s32.totalorder %s17, 0
    %p86 = por %p84, %p85
    %s88 = sadd.s32 %s87, 1
    %p91 = scmp.eq.s32.totalorder %s11, 1
    %p92 = scmp.ne.s32.totalorder %s87, %s89
    %p93 = scmp.eq.s32.totalorder %s11, 0
    %p94 = por %p92, %p93
    %p95 = scmp.ne.s32.totalorder %s87, %s89
    %p96 = scmp.eq.s32.totalorder %s16, 1
    %p97 = por %p95, %p96
    %p98 = scmp.ne.s32.totalorder %s89, %s90
    %p99 = scmp.eq.s32.totalorder %s16, 0
    %p100 = por %p98, %p99
    %p101 = scmp.ne.s32.totalorder %s89, %s90
    %p102 = scmp.eq.s32.totalorder %s17, 1
    %p103 = por %p101, %p102
    %p105 = scmp.ne.s32.totalorder %s90, %s104
    %p106 = scmp.eq.s32.totalorder %s17, 0
    %p107 = por %p105, %p106
    %s109 = sadd.s32 %s108, 1
    %p112 = scmp.eq.s32.totalorder %s11, 1
    %p113 = scmp.ne.s32.totalorder %s108, %s110
    %p114 = scmp.eq.s32.totalorder %s11, 0
    %p115 = por %p113, %p114
    %p116 = scmp.ne.s32.totalorder %s108, %s110
    %p117 = scmp.eq.s32.totalorder %s16, 1
    %p118 = por %p116, %p117
    %p119 = scmp.ne.s32.totalorder %s110, %s111
    %p120 = scmp.eq.s32.totalorder %s16, 0
    %p121 = por %p119, %p120
    %p122 = scmp.ne.s32.totalorder %s110, %s111
    %p123 = scmp.eq.s32.totalorder %s17, 1
    %p124 = por %p122, %p123
    %p126 = scmp.ne.s32.totalorder %s111, %s125
    %p127 = scmp.eq.s32.totalorder %s17, 0
    %p128 = por %p126, %p127
    %s129 = ssub.s32 %s11, %s18
    %p130 = scmp.eq.s32.totalorder %s129, 0
    %s132 = sadd.s32 %s131, 1
    %s133 = scalar_select %p130, %s131, %s132
    %p136 = pneg %p130
    %p137 = scmp.eq.s32.totalorder %s11, 1
    %p138 = por %p136, %p137
    %p139 = scmp.ne.s32.totalorder %s131, %s134
    %p140 = scmp.eq.s32.totalorder %s11, 0
    %p141 = por %p139, %p140
    %p142 = scmp.ne.s32.totalorder %s131, %s134
    %p143 = scmp.eq.s32.totalorder %s16, 1
    %p144 = por %p142, %p143
    %p145 = scmp.ne.s32.totalorder %s134, %s135
    %p146 = scmp.eq.s32.totalorder %s16, 0
    %p147 = por %p145, %p146
    %p148 = scmp.ne.s32.totalorder %s134, %s135
    %p149 = scmp.eq.s32.totalorder %s17, 1
    %p150 = por %p148, %p149
    %p152 = scmp.ne.s32.totalorder %s135, %s151
    %p153 = scmp.eq.s32.totalorder %s17, 0
    %p154 = por %p152, %p153
    %p155 = scmp.le.s32.totalorder 1, %s11
    %p156 = scmp.lt.s32.totalorder %s11, 3
    %p157 = pnand %p155, %p156
    %p158 = pneg %p157
    // Predicated region
    $region9: #{local_attention_forward.1} parent=5 // pred_check
      _
    $region10: #{local_attention_forward.1} parent=5 // pred_check_branch
      %160 = sbr.rel (%p157) target = $region12
    $region11: #{local_attention_forward.1} parent=5 // pred_region
      %s161 = ssub.s32 %s11, 1
      // Predicated region
      $region13: #{local_attention_forward.1} parent=11 // pred_check
        %p162 = pneg %p58
      $region14: #{local_attention_forward.1} parent=11 // pred_check_branch
        %164 = sbr.rel (%p162) target = $region16
      $region15: #{local_attention_forward.1} parent=11 // pred_region
        _
      $region16: #{local_attention_forward.1} parent=11 // pred_fallthru
        _
      // Predicated region
      $region17: #{local_attention_forward.1} parent=11 // pred_check
        %p165 = pneg %p79
      $region18: #{local_attention_forward.1} parent=11 // pred_check_branch
        %167 = sbr.rel (%p165) target = $region20
      $region19: #{local_attention_forward.1} parent=11 // pred_region
        _
      $region20: #{local_attention_forward.1} parent=11 // pred_fallthru
        _
      // Predicated region
      $region21: #{local_attention_forward.1} parent=11 // pred_check
        %p168 = pneg %p100
      $region22: #{local_attention_forward.1} parent=11 // pred_check_branch
        %170 = sbr.rel (%p168) target = $region24
      $region23: #{local_attention_forward.1} parent=11 // pred_region
        _
      $region24: #{local_attention_forward.1} parent=11 // pred_fallthru
        _
      // Predicated region
      $region25: #{local_attention_forward.1} parent=11 // pred_check
        %p171 = pneg %p121
      $region26: #{local_attention_forward.1} parent=11 // pred_check_branch
        %173 = sbr.rel (%p171) target = $region28
      $region27: #{local_attention_forward.1} parent=11 // pred_region
        _
      $region28: #{local_attention_forward.1} parent=11 // pred_fallthru
        _
    $region12: #{local_attention_forward.1} parent=5 // pred_fallthru
      _
    %p174 = scmp.lt.s32.totalorder %s11, 2
    // Predicated region
    $region29: #{local_attention_forward.1} parent=5 // pred_check
      %p175 = pneg %p174
    $region30: #{local_attention_forward.1} parent=5 // pred_check_branch
      %177 = sbr.rel (%p175) target = $region32
    $region31: #{local_attention_forward.1} parent=5 // pred_region
      // Predicated region
      $region33: #{local_attention_forward.1} parent=31 // pred_check
        %p178 = pneg %p31
      $region34: #{local_attention_forward.1} parent=31 // pred_check_branch
        %180 = sbr.rel (%p178) target = $region36
      $region35: #{local_attention_forward.1} parent=31 // pred_region
        %p181 = scmp.lt.s32.totalorder %s11, 1
        %s182 = scalar_select %p181, %s11, 1
        %s183 = smul.addr %s182, 2
        %s184 = smul.addr %s183, 4
        %s185 = scalar_lea.vmem %s0, %s184
      $region36: #{local_attention_forward.1} parent=31 // pred_fallthru
        _
    $region32: #{local_attention_forward.1} parent=5 // pred_fallthru
      _
    %p186 = scmp.le.s32.totalorder 1, %s11
    %p187 = scmp.lt.s32.totalorder %s11, 3
    %p188 = pnand %p186, %p187
    %p189 = pneg %p188
    // Predicated region
    $region37: #{local_attention_forward.1} parent=5 // pred_check
      _
    $region38: #{local_attention_forward.1} parent=5 // pred_check_branch
      %191 = sbr.rel (%p188) target = $region40
    $region39: #{local_attention_forward.1} parent=5 // pred_region
      %s192 = ssub.s32 %s11, 1
      %p193 = scmp.lt.s32.totalorder %s16, 1
      %s194 = scalar_select %p193, %s16, 1
      %s195 = smul.addr %s194, 2
      %s196 = smul.addr %s195, 4
      %s197 = scalar_lea.vmem %s0, %s196
      %p198 = pneg %p37
      %p199 = pneg %p34
      %p200 = pneg %p58
      %p201 = pneg %p55
      %p202 = pneg %p79
      %p203 = pneg %p76
      %p204 = pneg %p100
      %p205 = pneg %p97
      %p206 = pneg %p121
      %p207 = pneg %p118
      %p208 = pneg %p147
      %p209 = pneg %p144
      %p210 = scmp.lt.s32.totalorder %s16, 1
      %s211 = scalar_select %p210, %s16, 1
      %s212 = smul.addr %s211, 2
      %s213 = smul.addr %s212, 4
      %s214 = scalar_lea.vmem %s5, %s213
      %p215 = scmp.lt.s32.totalorder %s16, 1
      %s216 = scalar_select %p215, %s16, 1
      %s217 = smul.addr %s216, 2
      %s218 = smul.addr %s217, 4
      %s219 = scalar_lea.vmem %s0, %s218
      %p220 = scmp.lt.s32.totalorder %s16, 1
      %s221 = scalar_select %p220, %s16, 1
      %s222 = smul.addr %s221, 2
      %s223 = smul.addr %s222, 4
      %s224 = scalar_lea.vmem %s5, %s223
      %225 = vst [vmem:[#allocation2] sm:$0xf] 0.0
      %226 = vst [vmem:[#allocation2 + $0xc] sm:$0xf] 0.0
      %v227 = vld [vmem:[%s219] sm:$0xff]
      %228 = vst [vmem:[#allocation2 + $0x4] sm:$0xff] %v227
      %v229 = vlaneseq
      %v230 = vand.u32 %v229, 127
      %v231 = vadd.s32 %v230, 128
      %vm232 = vcmp.lt.s32.totalorder %v230, 0
      %v233 = vsub.s32 0, %v230
      %v234 = vsel %vm232, %v233, %v230
      %v235 = vshrl.u32 %v234, 4
      %v236 = vand.u32 %v234, 15
      %v237 = vsub.s32 0, %v236
      %v238 = vsel %vm232, %v237, %v236
      %vm239 = vcmp.lt.s32.totalorder %v231, 0
      %v240 = vsub.s32 0, %v231
      %v241 = vsel %vm239, %v240, %v231
      %v242 = vshrl.u32 %v241, 4
      %v243 = vand.u32 %v241, 15
      %v244 = vsub.s32 0, %v243
      %v245 = vsel %vm239, %v244, %v243
      %vm246 = vcmp.ne.s32.totalorder %v238, 0
      %vm247 = vcmp.ne.s32.totalorder %v245, 0
      %vm248 = vcmp.lt.s32.totalorder %v238, 0
      %vm249 = vcmp.lt.s32.totalorder %v245, 0
      %vm250 = vmand %vm248, %vm246
      %vm251 = vmand %vm249, %vm247
      %v252 = vadd.s32 %v238, 16
      %v253 = vadd.s32 %v245, 16
      %v254 = vsel %vm250, %v252, %v238
      %v255 = vsel %vm251, %v253, %v245
      %vm256 = vcmp.ne.s32.totalorder %v254, 0
      %vm257 = vcmp.ne.s32.totalorder %v255, 0
      %vm258 = vcmp.ne.s32.totalorder %v254, 15
      %vm259 = vcmp.ne.s32.totalorder %v255, 15
      %v260 = vld [vmem:[#allocation2] sm:$0xff]
      %v261 = vld [vmem:[#allocation2 + $0x8] sm:$0xf]
      %264 = vst [vmem:[#allocation1] ss:$2 sm:$0xff] %v260
      %s265 = scalar_lea.vmem [#allocation1], 16
      %266 = vst [vmem:[%s265] ss:$2 sm:$0xff] %v261
      %v267 = vld.sshfl [vmem:[#allocation1] sm:$0xff pattern:$0x75316420]
      %v268 = vld.sshfl [vmem:[#allocation1 + $0x8] sm:$0xff pattern:$0x75316420]
      %v269 = vld.sshfl [vmem:[#allocation1 + $0x10] sm:$0xff pattern:$0x75316420]
      %270 = vrot.lane.b32.xlu0 %v267, 17
      %v271 = vpop.permute.xlu0 %270
      %272 = vrot.lane.b32.xlu0 %v268, 17
      %v273 = vpop.permute.xlu0 %272
      %274 = vrot.lane.b32.xlu0 %v269, 17
      %v275 = vpop.permute.xlu0 %274
      %vm276 = vcmask 138240
      %v277 = vsel %vm276, %v271, %v273
      %v278 = vsel %vm276, %v273, %v275
      %v281 = vsel %vm256, %v277, 0.0
      %v282 = vsel %vm257, %v278, 0.0
      %v283 = vld [vmem:[#allocation2] sm:$0xff]
      %v284 = vld [vmem:[#allocation2 + $0x8] sm:$0xf]
      %287 = vst [vmem:[#allocation1] ss:$2 sm:$0xff] %v283
      %s288 = scalar_lea.vmem [#allocation1], 16
      %289 = vst [vmem:[%s288] ss:$2 sm:$0xff] %v284
      %v290 = vld.sshfl [vmem:[#allocation1] sm:$0xff pattern:$0x75316420]
      %v291 = vld.sshfl [vmem:[#allocation1 + $0x8] sm:$0xff pattern:$0x75316420]
      %v292 = vld.sshfl [vmem:[#allocation1 + $0x10] sm:$0xff pattern:$0x75316420]
      %293 = vrot.lane.b32.xlu0 %v290, 15
      %v294 = vpop.permute.xlu0 %293
      %295 = vrot.lane.b32.xlu0 %v291, 15
      %v296 = vpop.permute.xlu0 %295
      %297 = vrot.lane.b32.xlu0 %v292, 15
      %v298 = vpop.permute.xlu0 %297
      %vm299 = vcmask 121856
      %v300 = vsel %vm299, %v294, %v296
      %v301 = vsel %vm299, %v296, %v298
      %v304 = vsel %vm258, %v300, 0.0
      %v305 = vsel %vm259, %v301, 0.0
      %v306 = vld [vmem:[#allocation2] sm:$0xff]
      %v307 = vld [vmem:[#allocation2 + $0x8] sm:$0xf]
      %310 = vst [vmem:[#allocation1] ss:$2 sm:$0xff] %v306
      %s311 = scalar_lea.vmem [#allocation1], 16
      %312 = vst [vmem:[%s311] ss:$2 sm:$0xff] %v307
      %v313 = vld.sshfl [vmem:[#allocation1] sm:$0xff pattern:$0x75316420]
      %v314 = vld.sshfl [vmem:[#allocation1 + $0x8] sm:$0xff pattern:$0x75316420]
      %v315 = vld.sshfl [vmem:[#allocation1 + $0x10] sm:$0xff pattern:$0x75316420]
      %316 = vrot.lane.b32.xlu0 %v313, 1
      %v317 = vpop.permute.xlu0 %316
      %318 = vrot.lane.b32.xlu0 %v314, 1
      %v319 = vpop.permute.xlu0 %318
      %320 = vrot.lane.b32.xlu0 %v315, 1
      %v321 = vpop.permute.xlu0 %320
      %vm322 = vcmask 7168
      %v323 = vsel %vm322, %v317, %v319
      %v324 = vsel %vm322, %v319, %v321
      %v327 = vsel %vm256, %v323, 0.0
      %v328 = vsel %vm257, %v324, 0.0
      %v329 = vld [vmem:[#allocation2 + $0x4] sm:$0xff]
      %v330 = vld [vmem:[#allocation2 + $0x4] sm:$0xff]
      %v331 = vld [vmem:[#allocation2 + $0xc] sm:$0xf]
      %334 = vst [vmem:[#allocation1] ss:$2 sm:$0xff] %v330
      %s335 = scalar_lea.vmem [#allocation1], 16
      %336 = vst [vmem:[%s335] ss:$2 sm:$0xff] %v331
      %v337 = vld.sshfl [vmem:[#allocation1] sm:$0xff pattern:$0x75316420]
      %v338 = vld.sshfl [vmem:[#allocation1 + $0x8] sm:$0xff pattern:$0x75316420]
      %v339 = vld.sshfl [vmem:[#allocation1 + $0x10] sm:$0xff pattern:$0x75316420]
      %340 = vrot.lane.b32.xlu0 %v337, 127
      %v341 = vpop.permute.xlu0 %340
      %342 = vrot.lane.b32.xlu0 %v338, 127
      %v343 = vpop.permute.xlu0 %342
      %344 = vrot.lane.b32.xlu0 %v339, 127
      %v345 = vpop.permute.xlu0 %344
      %vm346 = vcmask 1039360
      %v347 = vsel %vm346, %v341, %v343
      %v348 = vsel %vm346, %v343, %v345
      %v351 = vsel %vm258, %v347, 0.0
      %v352 = vsel %vm259, %v348, 0.0
      %v353 = vld [vmem:[#allocation2 + $0x4] sm:$0xff]
      %v354 = vld [vmem:[#allocation2 + $0xc] sm:$0xf]
      %357 = vst [vmem:[#allocation1] ss:$2 sm:$0xff] %v353
      %s358 = scalar_lea.vmem [#allocation1], 16
      %359 = vst [vmem:[%s358] ss:$2 sm:$0xff] %v354
      %v360 = vld.sshfl [vmem:[#allocation1] sm:$0xff pattern:$0x75316420]
      %v361 = vld.sshfl [vmem:[#allocation1 + $0x8] sm:$0xff pattern:$0x75316420]
      %v362 = vld.sshfl [vmem:[#allocation1 + $0x10] sm:$0xff pattern:$0x75316420]
      %363 = vrot.lane.b32.xlu0 %v360, 113
      %v364 = vpop.permute.xlu0 %363
      %365 = vrot.lane.b32.xlu0 %v361, 113
      %v366 = vpop.permute.xlu0 %365
      %367 = vrot.lane.b32.xlu0 %v362, 113
      %v368 = vpop.permute.xlu0 %367
      %vm369 = vcmask 924672
      %v370 = vsel %vm369, %v364, %v366
      %v371 = vsel %vm369, %v366, %v368
      %v374 = vsel %vm256, %v370, 0.0
      %v375 = vsel %vm257, %v371, 0.0
      %v376 = vld [vmem:[#allocation2 + $0x4] sm:$0xff]
      %v377 = vld [vmem:[#allocation2 + $0xc] sm:$0xf]
      %380 = vst [vmem:[#allocation1] ss:$2 sm:$0xff] %v376
      %s381 = scalar_lea.vmem [#allocation1], 16
      %382 = vst [vmem:[%s381] ss:$2 sm:$0xff] %v377
      %v383 = vld.sshfl [vmem:[#allocation1] sm:$0xff pattern:$0x75316420]
      %v384 = vld.sshfl [vmem:[#allocation1 + $0x8] sm:$0xff pattern:$0x75316420]
      %v385 = vld.sshfl [vmem:[#allocation1 + $0x10] sm:$0xff pattern:$0x75316420]
      %386 = vrot.lane.b32.xlu0 %v383, 111
      %v387 = vpop.permute.xlu0 %386
      %388 = vrot.lane.b32.xlu0 %v384, 111
      %v389 = vpop.permute.xlu0 %388
      %390 = vrot.lane.b32.xlu0 %v385, 111
      %v391 = vpop.permute.xlu0 %390
      %vm392 = vcmask 908288
      %v393 = vsel %vm392, %v387, %v389
      %v394 = vsel %vm392, %v389, %v391
      %v397 = vsel %vm258, %v393, 0.0
      %v398 = vsel %vm259, %v394, 0.0
      %s399 = scalar_lea.vmem [#allocation1], 1
      %400 = vst [vmem:[%s399] ss:$2 sm:$0xff] %v283
      %s401 = scalar_lea.vmem [#allocation1], 17
      %402 = vst [vmem:[%s401] ss:$2 sm:$0xff] %v284
      %v403 = vld.sshfl [vmem:[#allocation1] sm:$0xff pattern:$0x75316420]
      %v404 = vld.sshfl [vmem:[#allocation1 + $0x8] sm:$0xff pattern:$0x75316420]
      %v405 = vld.sshfl [vmem:[#allocation1 + $0x10] sm:$0xff pattern:$0x75316420]
      %406 = vrot.lane.b32.xlu0 %v403, 16
      %v407 = vpop.permute.xlu0 %406
      %408 = vrot.lane.b32.xlu0 %v404, 16
      %v409 = vpop.permute.xlu0 %408
      %410 = vrot.lane.b32.xlu0 %v405, 16
      %v411 = vpop.permute.xlu0 %410
      %vm412 = vcmask 130048
      %v413 = vsel %vm412, %v407, %v409
      %v414 = vsel %vm412, %v409, %v411
      %v419 = vrot.slane %v327, 4
      %v420 = vrot.slane %v328, 4
      %424 = vst [vmem:[#allocation1] ss:$2 sm:$0xff] %v329
      %v425 = vld.sshfl [vmem:[#allocation1] sm:$0xff pattern:$0x75316420]
      %v426 = vld.sshfl [vmem:[#allocation1 + $0x8] sm:$0xff pattern:$0x75316420]
      %v431 = vrot.slane %v351, 4
      %v432 = vrot.slane %v352, 4
      %s435 = scalar_lea.vmem [#allocation1], 1
      %436 = vst [vmem:[%s435] ss:$2 sm:$0xff] %v376
      %s437 = scalar_lea.vmem [#allocation1], 17
      %438 = vst [vmem:[%s437] ss:$2 sm:$0xff] %v377
      %v439 = vld.sshfl [vmem:[#allocation1] sm:$0xff pattern:$0x75316420]
      %v440 = vld.sshfl [vmem:[#allocation1 + $0x8] sm:$0xff pattern:$0x75316420]
      %v441 = vld.sshfl [vmem:[#allocation1 + $0x10] sm:$0xff pattern:$0x75316420]
      %442 = vrot.lane.b32.xlu0 %v439, 112
      %v443 = vpop.permute.xlu0 %442
      %444 = vrot.lane.b32.xlu0 %v440, 112
      %v445 = vpop.permute.xlu0 %444
      %446 = vrot.lane.b32.xlu0 %v441, 112
      %v447 = vpop.permute.xlu0 %446
      %vm448 = vcmask 916480
      %v449 = vsel %vm448, %v443, %v445
      %v450 = vsel %vm448, %v445, %v447
      %vm453 = vcmask 1043456
      %v454 = vsel %vm453, %v281, %v413
      %v455 = vsel %vm453, %v282, %v414
      %v456 = vsel %vm453, %v304, %v419
      %v457 = vsel %vm453, %v305, %v420
      %v458 = vsel %vm453, %v425, %v431
      %v459 = vsel %vm453, %v426, %v432
      %v460 = vsel %vm453, %v374, %v449
      %v461 = vsel %vm453, %v375, %v450
      %v462 = vld [vmem:[%s1] sm:$0xf]
      %v463 = vld [vmem:[%s2] sm:$0xf]
      %465 = vset.pattern.permute.xlu0 0
      %466 = vperm.xlu0 %465, %v463
      %v467 = vpop.permute.xlu0 %466
      %vm469 = vcmask 293888
      %v471 = vsel %vm469, %v462, 0
      %v474 = vsel %vm453, %v397, 0
      %v477 = vsel %vm453, %v398, 0
      %479 = vmatpush.msra.mxu0 0.0
      %480 = vmatpush.msra.mxu0 0.0
      %481 = vmatpush.msra.mxu0 0.0
      %482 = vmatpush.msra.mxu0 0.0
      %483 = vmatpush.msra.mxu0 0.0
      %484 = vmatpush.msra.mxu0 0.0
      %485 = vmatpush.msra.mxu0 0.0
      %486 = vmatpush.msra.mxu0 0.0
      %487 = vmatpush.msra.mxu0 0.0
      %488 = vmatpush.msra.mxu0 0.0
      %489 = vmatpush.msra.mxu0 0.0
      %490 = vmatpush.msra.mxu0 %v474
      %491 = vmatpush.msra.mxu0 %v460
      %492 = vmatpush.msra.mxu0 %v458
      %493 = vmatpush.msra.mxu0 %v456
      %494 = vmatpush.msra.mxu0 %v454
      %495 = vmatmul.f32.gmra.mxu0 %v471
      %v496 = vpop.f32.mrf.mxu0
      %v497 = vadd.f32 %v467, %v496
      %498 = vdwg.mxu0
      %499 = vmatpush.msra.mxu0 0.0
      %500 = vmatpush.msra.mxu0 0.0
      %501 = vmatpush.msra.mxu0 0.0
      %502 = vmatpush.msra.mxu0 0.0
      %503 = vmatpush.msra.mxu0 0.0
      %504 = vmatpush.msra.mxu0 0.0
      %505 = vmatpush.msra.mxu0 0.0
      %506 = vmatpush.msra.mxu0 0.0
      %507 = vmatpush.msra.mxu0 0.0
      %508 = vmatpush.msra.mxu0 0.0
      %509 = vmatpush.msra.mxu0 0.0
      %510 = vmatpush.msra.mxu0 %v477
      %511 = vmatpush.msra.mxu0 %v461
      %512 = vmatpush.msra.mxu0 %v459
      %513 = vmatpush.msra.mxu0 %v457
      %514 = vmatpush.msra.mxu0 %v455
      %515 = vmatmul.f32.gmra.mxu0 %v471
      %v516 = vpop.f32.mrf.mxu0
      %v517 = vadd.f32 %v467, %v516
      %518 = vdwg.mxu0
      %v519 = vmax.f32 %v497, 0.0
      %v520 = vmax.f32 %v517, 0.0
      %v521 = vld [vmem:[%s3] sm:$0xf]
      %v522 = vld [vmem:[%s4] sm:$0xf]
      %524 = vset.pattern.permute.xlu0 0
      %525 = vperm.xlu0 %524, %v522
      %v526 = vpop.permute.xlu0 %525
      %vm528 = vcmask 31744
      %v530 = vsel %vm528, %v521, 0
      %v533 = vsel %vm453, %v519, 0
      %v536 = vsel %vm453, %v520, 0
      %538 = vmatpush.msra.mxu0 0.0
      %539 = vmatpush.msra.mxu0 0.0
      %540 = vmatpush.msra.mxu0 0.0
      %541 = vmatpush.msra.mxu0 0.0
      %542 = vmatpush.msra.mxu0 0.0
      %543 = vmatpush.msra.mxu0 0.0
      %544 = vmatpush.msra.mxu0 0.0
      %545 = vmatpush.msra.mxu0 0.0
      %546 = vmatpush.msra.mxu0 0.0
      %547 = vmatpush.msra.mxu0 0.0
      %548 = vmatpush.msra.mxu0 0.0
      %549 = vmatpush.msra.mxu0 0.0
      %550 = vmatpush.msra.mxu0 0.0
      %551 = vmatpush.msra.mxu0 0.0
      %552 = vmatpush.msra.mxu0 0.0
      %553 = vmatpush.msra.mxu0 %v533
      %554 = vmatmul.f32.gmra.mxu0 %v530
      %v555 = vpop.f32.mrf.mxu0
      %v556 = vadd.f32 %v526, %v555
      %557 = vdwg.mxu0
      %558 = vmatpush.msra.mxu0 0.0
      %559 = vmatpush.msra.mxu0 0.0
      %560 = vmatpush.msra.mxu0 0.0
      %561 = vmatpush.msra.mxu0 0.0
      %562 = vmatpush.msra.mxu0 0.0
      %563 = vmatpush.msra.mxu0 0.0
      %564 = vmatpush.msra.mxu0 0.0
      %565 = vmatpush.msra.mxu0 0.0
      %566 = vmatpush.msra.mxu0 0.0
      %567 = vmatpush.msra.mxu0 0.0
      %568 = vmatpush.msra.mxu0 0.0
      %569 = vmatpush.msra.mxu0 0.0
      %570 = vmatpush.msra.mxu0 0.0
      %571 = vmatpush.msra.mxu0 0.0
      %572 = vmatpush.msra.mxu0 0.0
      %573 = vmatpush.msra.mxu0 %v536
      %574 = vmatmul.f32.gmra.mxu0 %v530
      %v575 = vpop.f32.mrf.mxu0
      %v576 = vadd.f32 %v526, %v575
      %577 = vdwg.mxu0
      %v580 = vrot.slane %v576, 4
      %v581 = vsel %vm453, %v556, %v580
      %583 = vst [vmem:[%s224] sm:$0xff] %v581
      %p584 = scmp.lt.s32.totalorder %s16, 1
      %s585 = scalar_select %p584, %s16, 1
      %s586 = smul.addr %s585, 2
      %s587 = smul.addr %s586, 4
      %s588 = scalar_lea.vmem %s5, %s587
      // Predicated region
      $region41: #{local_attention_forward.1} parent=39 // pred_check
        %p589 = pneg %p144
      $region42: #{local_attention_forward.1} parent=39 // pred_check_branch
        %591 = sbr.rel (%p589) target = $region44
      $region43: #{local_attention_forward.1} parent=39 // pred_region
        _
      $region44: #{local_attention_forward.1} parent=39 // pred_fallthru
        _
    $region40: #{local_attention_forward.1} parent=5 // pred_fallthru
      _
    %p592 = scmp.le.s32.totalorder 2, %s11
    // Predicated region
    $region45: #{local_attention_forward.1} parent=5 // pred_check
      %p593 = pneg %p592
    $region46: #{local_attention_forward.1} parent=5 // pred_check_branch
      %595 = sbr.rel (%p593) target = $region48
    $region47: #{local_attention_forward.1} parent=5 // pred_region
      %s596 = ssub.s32 %s11, 2
      // Predicated region
      $region49: #{local_attention_forward.1} parent=47 // pred_check
        %p597 = pneg %p150
      $region50: #{local_attention_forward.1} parent=47 // pred_check_branch
        %599 = sbr.rel (%p597) target = $region52
      $region51: #{local_attention_forward.1} parent=47 // pred_region
        %p600 = scmp.lt.s32.totalorder %s17, 1
        %s601 = scalar_select %p600, %s17, 1
        %s602 = smul.addr %s601, 2
        %s603 = smul.addr %s602, 4
        %s604 = scalar_lea.vmem %s5, %s603
      $region52: #{local_attention_forward.1} parent=47 // pred_fallthru
        _
    $region48: #{local_attention_forward.1} parent=5 // pred_fallthru
      _
  $region6: #{local_attention_forward.1} parent=0 // loop_footer
    %s15 = sadd.s32 1, %s11
  $region7: #{local_attention_forward.1} parent=0 // loop_footer_branch
    %10 = sbr.rel target = $region3
  $region8: #{local_attention_forward.1} parent=0 // loop_exit
    _

</llo_original>
